<compile_context>
chip_gen: v5e
topology: v5e:2x2
jax: 0.10.0
libtpu: 0.0.40
codegen_flags: <defaults>
</compile_context>

<pallas_src>
import functools

import jax
import jax.numpy as jnp
from jax.experimental import pallas as pl
from jax.experimental.pallas import tpu as pltpu


# --------------------------------------------------------------------------
# Kernel 1: global average + max pooling, HW tiled as a resident reduction.
# --------------------------------------------------------------------------
def pool_kernel(x_ref, out_ref, *, hw, hw_tile):
    # x_ref:   (n_tile, c_tile, hw_tile) block in the input's native dtype.
    # out_ref: (n_tile, 2, c_tile) f32 block, resident across the HW grid axis.
    #          [:, 0, :] holds the running sum (scaled to mean at the end),
    #          [:, 1, :] holds the running max.
    h = pl.program_id(2)

    x = x_ref[...].astype(jnp.float32)  # upcast after load (native-dtype DMA)

    if hw % hw_tile != 0:
        # Mask the out-of-bounds tail of the last partial spatial tile.
        base = h * hw_tile
        lane = jax.lax.broadcasted_iota(jnp.int32, x.shape, dimension=2)
        valid = (base + lane) < hw
        x_sum = jnp.where(valid, x, 0.0)
        x_max = jnp.where(valid, x, -jnp.inf)
    else:
        x_sum = x
        x_max = x

    s = jnp.sum(x_sum, axis=-1)  # (n_tile, c_tile)
    m = jnp.max(x_max, axis=-1)  # (n_tile, c_tile)

    @pl.when(h == 0)
    def _():
        out_ref[:, 0, :] = s
        out_ref[:, 1, :] = m

    @pl.when(h > 0)
    def _():
        out_ref[:, 0, :] = out_ref[:, 0, :] + s
        out_ref[:, 1, :] = jnp.maximum(out_ref[:, 1, :], m)

    @pl.when(h == pl.num_programs(2) - 1)
    def _():
        out_ref[:, 0, :] = out_ref[:, 0, :] * jnp.float32(1.0 / hw)


# --------------------------------------------------------------------------
# Kernel 2: shared MLP (two 1x1 convs == matmuls) + sigmoid epilogue.
# --------------------------------------------------------------------------
def fc_sigmoid_kernel(v_ref, w1t_ref, w2t_ref, o_ref):
    # v_ref: (2N, C) f32 — rows [avg_0..avg_{N-1}, max_0..max_{N-1}] (stacked in
    # the wrapper; no in-kernel concatenate). w1t: (C, hidden); w2t: (hidden, C).
    n = o_ref.shape[0]
    v = v_ref[...]
    hid = jnp.maximum(
        jnp.dot(v, w1t_ref[...], preferred_element_type=jnp.float32), 0.0
    )                                                                # ReLU
    y = jnp.dot(hid, w2t_ref[...], preferred_element_type=jnp.float32)  # (2N, C)
    s = y[:n, :] + y[n:, :]                                          # fc(avg)+fc(max)
    o_ref[...] = (1.0 / (1.0 + jnp.exp(-s))).astype(o_ref.dtype)     # sigmoid


# --------------------------------------------------------------------------
# Tile selection: budgeted for v7x (64 MiB physical VMEM, double-buffered input).
# --------------------------------------------------------------------------
def _choose_tiles(N, C, HW, itemsize, per_buf_budget_bytes):
    # Channel tile: multiple of 128 lanes when possible, else full extent (legal).
    if C % 256 == 0:
        c_tile = 256
    elif C % 128 == 0:
        c_tile = 128
    else:
        c_tile = C

    # Spatial tile: full extent if it fits the per-buffer budget, else the largest
    # 128-multiple that does (last partial tile handled by in-kernel masking).
    if c_tile * HW * itemsize <= per_buf_budget_bytes:
        hw_tile = HW
    else:
        hw_tile = (per_buf_budget_bytes // (c_tile * itemsize)) // 128 * 128
        hw_tile = max(128, min(hw_tile, HW))

    # Fold batch into the block when the whole (N, c_tile, HW) slab is small —
    # the toy shape then runs as a single grid step.
    if hw_tile == HW and N * c_tile * HW * itemsize <= per_buf_budget_bytes:
        n_tile = N
    else:
        n_tile = 1
    return n_tile, c_tile, hw_tile


def channel_attention(x_nchw, w1, w2, *, per_buf_budget_bytes=12 * 1024 * 1024):
    """x_nchw: (N, C, H, W); w1: (C//16, C); w2: (C, C//16).

    Returns (N, C, 1, 1) f32, matching the PyTorch module's output.
    """
    N, C, H, W = x_nchw.shape
    HW = H * W
    x_flat = x_nchw.reshape(N, C, HW)  # native dtype; no wrapper-side cast
    itemsize = jnp.dtype(x_flat.dtype).itemsize

    n_tile, c_tile, hw_tile = _choose_tiles(N, C, HW, itemsize, per_buf_budget_bytes)
    grid = (N // n_tile, pl.cdiv(C, c_tile), pl.cdiv(HW, hw_tile))

    # Memory-bound cost hint: read x once (native dtype), write tiny pooled slab.
    pool_cost = pl.CostEstimate(
        flops=2 * N * C * HW,
        transcendentals=0,
        bytes_accessed=N * C * HW * itemsize + 2 * N * C * 4,
    )

    pooled = pl.pallas_call(
        functools.partial(pool_kernel, hw=HW, hw_tile=hw_tile),
        out_shape=jax.ShapeDtypeStruct((N, 2, C), jnp.float32),
        grid_spec=pltpu.PrefetchScalarGridSpec(
            num_scalar_prefetch=0,
            grid=grid,
            in_specs=[
                pl.BlockSpec((n_tile, c_tile, hw_tile), lambda n, c, h: (n, c, h))
            ],
            out_specs=pl.BlockSpec((n_tile, 2, c_tile), lambda n, c, h: (n, 0, c)),
        ),
        compiler_params=pltpu.CompilerParams(
            dimension_semantics=("parallel", "parallel", "arbitrary"),
            vmem_limit_bytes=48 * 1024 * 1024,
        ),
        cost_estimate=pool_cost,
    )(x_flat)

    # Tiny wrapper-side rearrangement (N*C elements): stack avg/max rows so the
    # epilogue kernel needs no in-kernel concatenate.
    avg2 = pooled[:, 0, :]                                  # (N, C)
    mx2 = pooled[:, 1, :]                                   # (N, C)
    v = jnp.concatenate([avg2, mx2], axis=0)                # (2N, C)

    # Pre-transpose weights in the wrapper (free at XLA level; no in-kernel vxpose).
    w1t = jnp.asarray(w1, jnp.float32).T                    # (C, hidden)
    w2t = jnp.asarray(w2, jnp.float32).T                    # (hidden, C)

    out = pl.pallas_call(
        fc_sigmoid_kernel,
        out_shape=jax.ShapeDtypeStruct((N, C), jnp.float32),
        in_specs=[pl.BlockSpec(memory_space=pltpu.MemorySpace.VMEM)] * 3,
        out_specs=pl.BlockSpec(memory_space=pltpu.MemorySpace.VMEM),
    )(v, w1t, w2t)

    return out.reshape(N, C, 1, 1)


# --------------------------------------------------------------------------
# Pure-JAX reference replicating the PyTorch forward exactly.
# --------------------------------------------------------------------------
def _reference(x_nchw, w1, w2):
    avg = jnp.mean(x_nchw.astype(jnp.float32), axis=(2, 3))  # (N, C)
    mx = jnp.max(x_nchw.astype(jnp.float32), axis=(2, 3))    # (N, C)

    def fc(v):
        h = jnp.maximum(v @ w1.T, 0.0)
        return h @ w2.T

    return jax.nn.sigmoid(fc(avg) + fc(mx)).reshape(*avg.shape, 1, 1)


if __name__ == "__main__":
    # Small but valid shapes: in_planes must be >= 16 since fc uses C // 16.
    N, C, H, W = 2, 32, 16, 16
    hidden = C // 16  # = 2

    key = jax.random.PRNGKey(0)
    kx, k1, k2, kx2 = jax.random.split(key, 4)

    x = jax.random.normal(kx, (N, C, H, W), dtype=jnp.float32)
    # Deterministic, kaiming-ish scaled weights (Conv2d 1x1, no bias).
    w1 = jax.random.normal(k1, (hidden, C), dtype=jnp.float32) * (2.0 / C) ** 0.5
    w2 = jax.random.normal(k2, (C, hidden), dtype=jnp.float32) * (2.0 / hidden) ** 0.5

    # Test 1: toy shape — single grid step (batch folded, full HW extent).
    out = jax.block_until_ready(channel_attention(x, w1, w2))
    ref = _reference(x, w1, w2)
    assert out.shape == (N, C, 1, 1)
    assert jnp.allclose(out, ref, atol=1e-5, rtol=1e-5), float(
        jnp.max(jnp.abs(out - ref))
    )

    # Test 2: force the tiled-HW reduction path (multi-step accumulation + masked
    # partial last tile) by shrinking the per-buffer budget; still tiny data.
    x2 = jax.random.normal(kx2, (3, C, 17, 16), dtype=jnp.float32)  # HW = 272
    out2 = jax.block_until_ready(
        channel_attention(x2, w1, w2, per_buf_budget_bytes=C * 128 * 4)
    )
    ref2 = _reference(x2, w1, w2)
    assert out2.shape == (3, C, 1, 1)
    assert jnp.allclose(out2, ref2, atol=1e-5, rtol=1e-5), float(
        jnp.max(jnp.abs(out2 - ref2))
    )

    print("KERNEL_OK")
</pallas_src>

<mosaic_0001>
module attributes {stable_mosaic.version = 11 : i64} {
  func.func @pool_kernel(%arg0: i32, %arg1: i32, %arg2: i32, %arg3: memref<2x32x256xf32, #tpu.memory_space<vmem>>, %arg4: memref<2x2x32xf32, #tpu.memory_space<vmem>>) attributes {dimension_semantics = [#tpu.dimension_semantics<parallel>, #tpu.dimension_semantics<parallel>, #tpu.dimension_semantics<arbitrary>], iteration_bounds = array<i64: 1, 1, 1>, scalar_prefetch = 0 : i64, scratch_operands = 0 : i64, tpu.core_type = #tpu.core_type<tc>, window_params = [{transform_indices = @transform_0, window_bounds = array<i64: 2, 32, 256>}, {transform_indices = @transform_1, window_bounds = array<i64: 2, 2, 32>}]} {
    %c0 = arith.constant 0 : index
    %c0_0 = arith.constant 0 : index
    %c0_1 = arith.constant 0 : index
    %0 = vector.load %arg3[%c0, %c0_0, %c0_1] : memref<2x32x256xf32, #tpu.memory_space<vmem>>, vector<2x32x256xf32>
    %cst = arith.constant dense<0.000000e+00> : vector<2x32xf32>
    %1 = vector.multi_reduction <add>, %0, %cst [2] : vector<2x32x256xf32> to vector<2x32xf32>
    %cst_2 = arith.constant dense<0xFF800000> : vector<2x32xf32>
    %2 = vector.multi_reduction <maximumf>, %0, %cst_2 [2] : vector<2x32x256xf32> to vector<2x32xf32>
    %c0_i32 = arith.constant 0 : i32
    %3 = arith.cmpi eq, %arg2, %c0_i32 : i32
    %4 = arith.extui %3 : i1 to i32
    %c0_i32_3 = arith.constant 0 : i32
    %5 = arith.cmpi ne, %4, %c0_i32_3 : i32
    scf.if %5 {
      %c0_8 = arith.constant 0 : index
      %c0_9 = arith.constant 0 : index
      %c0_10 = arith.constant 0 : index
      %12 = vector.load %arg4[%c0_8, %c0_9, %c0_10] : memref<2x2x32xf32, #tpu.memory_space<vmem>>, vector<2x1x32xf32>
      %13 = vector.shape_cast %12 : vector<2x1x32xf32> to vector<2x32xf32>
      %14 = vector.shape_cast %1 : vector<2x32xf32> to vector<2x1x32xf32>
      tpu.vector_store %arg4[%c0_8, %c0_9, %c0_10], %14 {strides = array<i32>} : memref<2x2x32xf32, #tpu.memory_space<vmem>>, vector<2x1x32xf32>,
      %c0_11 = arith.constant 0 : index
      %c1 = arith.constant 1 : index
      %c0_12 = arith.constant 0 : index
      %15 = vector.load %arg4[%c0_11, %c1, %c0_12] : memref<2x2x32xf32, #tpu.memory_space<vmem>>, vector<2x1x32xf32>
      %16 = vector.shape_cast %15 : vector<2x1x32xf32> to vector<2x32xf32>
      %17 = vector.shape_cast %2 : vector<2x32xf32> to vector<2x1x32xf32>
      tpu.vector_store %arg4[%c0_11, %c1, %c0_12], %17 {strides = array<i32>} : memref<2x2x32xf32, #tpu.memory_space<vmem>>, vector<2x1x32xf32>,
    } else {
    }
    %c0_i32_4 = arith.constant 0 : i32
    %6 = arith.cmpi sgt, %arg2, %c0_i32_4 : i32
    %7 = arith.extui %6 : i1 to i32
    %c0_i32_5 = arith.constant 0 : i32
    %8 = arith.cmpi ne, %7, %c0_i32_5 : i32
    scf.if %8 {
      %c0_8 = arith.constant 0 : index
      %c0_9 = arith.constant 0 : index
      %c0_10 = arith.constant 0 : index
      %12 = vector.load %arg4[%c0_8, %c0_9, %c0_10] : memref<2x2x32xf32, #tpu.memory_space<vmem>>, vector<2x1x32xf32>
      %13 = vector.shape_cast %12 : vector<2x1x32xf32> to vector<2x32xf32>
      %14 = arith.addf %13, %1 : vector<2x32xf32>
      %c0_11 = arith.constant 0 : index
      %c0_12 = arith.constant 0 : index
      %c0_13 = arith.constant 0 : index
      %15 = vector.load %arg4[%c0_11, %c0_12, %c0_13] : memref<2x2x32xf32, #tpu.memory_space<vmem>>, vector<2x1x32xf32>
      %16 = vector.shape_cast %15 : vector<2x1x32xf32> to vector<2x32xf32>
      %17 = vector.shape_cast %14 : vector<2x32xf32> to vector<2x1x32xf32>
      tpu.vector_store %arg4[%c0_11, %c0_12, %c0_13], %17 {strides = array<i32>} : memref<2x2x32xf32, #tpu.memory_space<vmem>>, vector<2x1x32xf32>,
      %c0_14 = arith.constant 0 : index
      %c1 = arith.constant 1 : index
      %c0_15 = arith.constant 0 : index
      %18 = vector.load %arg4[%c0_14, %c1, %c0_15] : memref<2x2x32xf32, #tpu.memory_space<vmem>>, vector<2x1x32xf32>
      %19 = vector.shape_cast %18 : vector<2x1x32xf32> to vector<2x32xf32>
      %20 = arith.maximumf %19, %2 : vector<2x32xf32>
      %c0_16 = arith.constant 0 : index
      %c1_17 = arith.constant 1 : index
      %c0_18 = arith.constant 0 : index
      %21 = vector.load %arg4[%c0_16, %c1_17, %c0_18] : memref<2x2x32xf32, #tpu.memory_space<vmem>>, vector<2x1x32xf32>
      %22 = vector.shape_cast %21 : vector<2x1x32xf32> to vector<2x32xf32>
      %23 = vector.shape_cast %20 : vector<2x32xf32> to vector<2x1x32xf32>
      tpu.vector_store %arg4[%c0_16, %c1_17, %c0_18], %23 {strides = array<i32>} : memref<2x2x32xf32, #tpu.memory_space<vmem>>, vector<2x1x32xf32>,
    } else {
    }
    %c0_i32_6 = arith.constant 0 : i32
    %9 = arith.cmpi eq, %arg2, %c0_i32_6 : i32
    %10 = arith.extui %9 : i1 to i32
    %c0_i32_7 = arith.constant 0 : i32
    %11 = arith.cmpi ne, %10, %c0_i32_7 : i32
    scf.if %11 {
      %c0_8 = arith.constant 0 : index
      %c0_9 = arith.constant 0 : index
      %c0_10 = arith.constant 0 : index
      %12 = vector.load %arg4[%c0_8, %c0_9, %c0_10] : memref<2x2x32xf32, #tpu.memory_space<vmem>>, vector<2x1x32xf32>
      %13 = vector.shape_cast %12 : vector<2x1x32xf32> to vector<2x32xf32>
      %cst_11 = arith.constant 3.906250e-03 : f32
      %14 = vector.broadcast %cst_11 : f32 to vector<2x32xf32>
      %15 = arith.mulf %13, %14 : vector<2x32xf32>
      %c0_12 = arith.constant 0 : index
      %c0_13 = arith.constant 0 : index
      %c0_14 = arith.constant 0 : index
      %16 = vector.load %arg4[%c0_12, %c0_13, %c0_14] : memref<2x2x32xf32, #tpu.memory_space<vmem>>, vector<2x1x32xf32>
      %17 = vector.shape_cast %16 : vector<2x1x32xf32> to vector<2x32xf32>
      %18 = vector.shape_cast %15 : vector<2x32xf32> to vector<2x1x32xf32>
      tpu.vector_store %arg4[%c0_12, %c0_13, %c0_14], %18 {strides = array<i32>} : memref<2x2x32xf32, #tpu.memory_space<vmem>>, vector<2x1x32xf32>,
    } else {
    }
    return
  }
  func.func @transform_0(%arg0: i32, %arg1: i32, %arg2: i32) -> (i32, i32, i32) {
    %c0_i32 = arith.constant 0 : i32
    return %arg0, %arg1, %arg2 : i32, i32, i32
  }
  func.func @transform_1(%arg0: i32, %arg1: i32, %arg2: i32) -> (i32, i32, i32) {
    %c0_i32 = arith.constant 0 : i32
    %c0_i32_0 = arith.constant 0 : i32
    return %arg0, %c0_i32, %arg1 : i32, i32, i32
  }
}

</mosaic_0001>

<llo_original>
// kernel: tpu_custom_call.1
$region0: #{tpu_custom_call.1}
  #allocation0 [shape = 'u32[]', space=smem, size = 0x4, offset = 0x4, fixed_abs, tag = 'smem constant byte address 0x4 - core index']
  #allocation1 [shape = 'u32[72,128]{1,0:T(1,128)}', space=vmem, size = 0x9000, scoped, tag = 'internal scratch']
  %s0 = inlined_call_operand.hbm [shape: f32[2,32,256], index: 0, kind: input, shape index: {}]
  %s1 = inlined_call_operand.hbm [shape: f32[2,2,32], index: 1, kind: output, shape index: {}]
  %s2 = sld [smem:[#allocation0]]
  $region30: #{tpu_custom_call.1} parent=0
    _
  %s4 = ssub.s32 1, %s2
  %s5 = scalar_select 0, %s4, %s2
  $region1: #{tpu_custom_call.1} parent=0
    #allocation2 [shape = 'u8[65536]{0}', space=vmem, size = 0x10000, scoped, tag = 'input window, operand 0, single buffered']
    #allocation3 [shape = 's32[1]{0}', space=sflag, size = 0x4, scoped, tag = 'scoped memory for tpu_custom_call.1']
    #allocation4 [shape = 's32[1]{0}', space=sflag, size = 0x4, scoped, tag = 'scoped memory for tpu_custom_call.1']
    #allocation5 [shape = 'u8[2048]{0}', space=vmem, size = 0x800, scoped, tag = 'output window, operand 0, single buffered']
    %6 = vsyncpa [#allocation3], 0
    %7 = vsyncpa [#allocation4], 0
    // Predicated region
    $region2: #{tpu_custom_call.1} parent=1 // pred_check
      _
    $region3: #{tpu_custom_call.1} parent=1 // pred_check_branch
      %9 = sbr.rel (0) target = $region5
    $region4: #{tpu_custom_call.1} parent=1 // pred_region
      %11 = vsyncadd [#allocation3], 0
      %s12 = sshll.u32 %s0, 4
      %s13 = int_to_ptr.hbm [resolvable:$true] %s12
      %s14 = sshll.u32 [#allocation2], 4
      %s15 = int_to_ptr.vmem [resolvable:$true] %s14
      %20 = dma.hbm_to_vmem [thread:$0]  %s13, 2048, %s15, [#allocation3], 256, 256, 16
    $region5: #{tpu_custom_call.1} parent=1 // pred_fallthru
      _
    // Predicated region
    $region6: #{tpu_custom_call.1} parent=1 // pred_check
      _
    $region7: #{tpu_custom_call.1} parent=1 // pred_check_branch
      %22 = sbr.rel (0) target = $region9
    $region8: #{tpu_custom_call.1} parent=1 // pred_region
      %24 = dma.done [#allocation3], 2048
    $region9: #{tpu_custom_call.1} parent=1 // pred_fallthru
      _
    %v25 = vld [vmem:[#allocation2] sm:$0xff]
    %v26 = vld [vmem:[#allocation2 + $0x8] sm:$0xff]
    %v27 = vld [vmem:[#allocation2 + $0x10] sm:$0xff]
    %v28 = vld [vmem:[#allocation2 + $0x18] sm:$0xff]
    %v29 = vld [vmem:[#allocation2 + $0x20] sm:$0xff]
    %v30 = vld [vmem:[#allocation2 + $0x28] sm:$0xff]
    %v31 = vld [vmem:[#allocation2 + $0x30] sm:$0xff]
    %v32 = vld [vmem:[#allocation2 + $0x38] sm:$0xff]
    %v33 = vld [vmem:[#allocation2 + $0x40] sm:$0xff]
    %v34 = vld [vmem:[#allocation2 + $0x48] sm:$0xff]
    %v35 = vld [vmem:[#allocation2 + $0x50] sm:$0xff]
    %v36 = vld [vmem:[#allocation2 + $0x58] sm:$0xff]
    %v37 = vld [vmem:[#allocation2 + $0x60] sm:$0xff]
    %v38 = vld [vmem:[#allocation2 + $0x68] sm:$0xff]
    %v39 = vld [vmem:[#allocation2 + $0x70] sm:$0xff]
    %v40 = vld [vmem:[#allocation2 + $0x78] sm:$0xff]
    %v41 = vadd.f32 %v25, %v26
    %42 = vadd.xlane.f32.xlu0 %v41
    %v43 = vpop.xlane.xlu0 %42
    %v44 = vadd.f32 %v27, %v28
    %45 = vadd.xlane.f32.xlu0 %v44
    %v46 = vpop.xlane.xlu0 %45
    %v47 = vadd.f32 %v29, %v30
    %48 = vadd.xlane.f32.xlu0 %v47
    %v49 = vpop.xlane.xlu0 %48
    %v50 = vadd.f32 %v31, %v32
    %51 = vadd.xlane.f32.xlu0 %v50
    %v52 = vpop.xlane.xlu0 %51
    %v53 = vadd.f32 %v33, %v34
    %54 = vadd.xlane.f32.xlu0 %v53
    %v55 = vpop.xlane.xlu0 %54
    %v56 = vadd.f32 %v35, %v36
    %57 = vadd.xlane.f32.xlu0 %v56
    %v58 = vpop.xlane.xlu0 %57
    %v59 = vadd.f32 %v37, %v38
    %60 = vadd.xlane.f32.xlu0 %v59
    %v61 = vpop.xlane.xlu0 %60
    %v62 = vadd.f32 %v39, %v40
    %63 = vadd.xlane.f32.xlu0 %v62
    %v64 = vpop.xlane.xlu0 %63
    %v65 = vmax.f32 %v25, %v26
    %66 = vmax.xlane.f32.xlu0 %v65
    %v67 = vpop.xlane.xlu0 %66
    %v68 = vmax.f32 %v27, %v28
    %69 = vmax.xlane.f32.xlu0 %v68
    %v70 = vpop.xlane.xlu0 %69
    %v71 = vmax.f32 %v29, %v30
    %72 = vmax.xlane.f32.xlu0 %v71
    %v73 = vpop.xlane.xlu0 %72
    %v74 = vmax.f32 %v31, %v32
    %75 = vmax.xlane.f32.xlu0 %v74
    %v76 = vpop.xlane.xlu0 %75
    %v77 = vmax.f32 %v33, %v34
    %78 = vmax.xlane.f32.xlu0 %v77
    %v79 = vpop.xlane.xlu0 %78
    %v80 = vmax.f32 %v35, %v36
    %81 = vmax.xlane.f32.xlu0 %v80
    %v82 = vpop.xlane.xlu0 %81
    %v83 = vmax.f32 %v37, %v38
    %84 = vmax.xlane.f32.xlu0 %v83
    %v85 = vpop.xlane.xlu0 %84
    %v86 = vmax.f32 %v39, %v40
    %87 = vmax.xlane.f32.xlu0 %v86
    %v88 = vpop.xlane.xlu0 %87
    %p89 = scmp.eq.s32.totalorder 0, 0
    // Predicated region
    $region10: #{tpu_custom_call.1} parent=1 // pred_check
      %p90 = pneg %p89
    $region11: #{tpu_custom_call.1} parent=1 // pred_check_branch
      %92 = sbr.rel (%p90) target = $region13
    $region12: #{tpu_custom_call.1} parent=1 // pred_region
      %v101 = vlaneseq
      %v102 = vand.u32 %v101, 127
      %v103 = vperm.slane %v43, %v102
      %v104 = vadd.s32 %v102, 4294967288
      %v105 = vperm.slane %v46, %v104
      %vm106 = vcmask 130112
      %v107 = vsel %vm106, %v105, %v103
      %v108 = vadd.s32 %v102, 4294967280
      %v109 = vperm.slane %v49, %v108
      %vm110 = vcmask 195712
      %v111 = vsel %vm110, %v109, %v107
      %v112 = vadd.s32 %v102, 4294967272
      %v113 = vperm.slane %v52, %v112
      %vm114 = vcmask 261312
      %v115 = vsel %vm114, %v113, %v111
      %v116 = vperm.slane %v55, %v102
      %v117 = vperm.slane %v58, %v104
      %v118 = vsel %vm106, %v117, %v116
      %v119 = vperm.slane %v61, %v108
      %v120 = vsel %vm110, %v119, %v118
      %v121 = vperm.slane %v64, %v112
      %v122 = vsel %vm114, %v121, %v120
      %vm125 = vcmask 253952
      %126 = vst.msk [vmem:[#allocation5] sm:$0x1] %vm125, %v115
      %127 = vst.msk [vmem:[#allocation5 + $0x2] sm:$0x1] %vm125, %v122
      %v136 = vperm.slane %v67, %v102
      %v137 = vperm.slane %v70, %v104
      %v138 = vsel %vm106, %v137, %v136
      %v139 = vperm.slane %v73, %v108
      %v140 = vsel %vm110, %v139, %v138
      %v141 = vperm.slane %v76, %v112
      %v142 = vsel %vm114, %v141, %v140
      %v143 = vperm.slane %v79, %v102
      %v144 = vperm.slane %v82, %v104
      %v145 = vsel %vm106, %v144, %v143
      %v146 = vperm.slane %v85, %v108
      %v147 = vsel %vm110, %v146, %v145
      %v148 = vperm.slane %v88, %v112
      %v149 = vsel %vm114, %v148, %v147
      %152 = vst.msk [vmem:[#allocation5 + $0x1] sm:$0x1] %vm125, %v142
      %153 = vst.msk [vmem:[#allocation5 + $0x3] sm:$0x1] %vm125, %v149
    $region13: #{tpu_custom_call.1} parent=1 // pred_fallthru
      _
    %p154 = scmp.gt.s32.totalorder 0, 0
    // Predicated region
    $region14: #{tpu_custom_call.1} parent=1 // pred_check
      %p155 = pneg %p154
    $region15: #{tpu_custom_call.1} parent=1 // pred_check_branch
      %157 = sbr.rel (%p155) target = $region17
    $region16: #{tpu_custom_call.1} parent=1 // pred_region
      %v158 = vld [vmem:[#allocation5] sm:$0x1]
      %v159 = vld [vmem:[#allocation5 + $0x2] sm:$0x1]
      %v168 = vlaneseq
      %v169 = vand.u32 %v168, 127
      %v170 = vperm.slane %v43, %v169
      %v171 = vadd.s32 %v169, 4294967288
      %v172 = vperm.slane %v46, %v171
      %vm173 = vcmask 130112
      %v174 = vsel %vm173, %v172, %v170
      %v175 = vadd.s32 %v169, 4294967280
      %v176 = vperm.slane %v49, %v175
      %vm177 = vcmask 195712
      %v178 = vsel %vm177, %v176, %v174
      %v179 = vadd.s32 %v169, 4294967272
      %v180 = vperm.slane %v52, %v179
      %vm181 = vcmask 261312
      %v182 = vsel %vm181, %v180, %v178
      %v183 = vperm.slane %v55, %v169
      %v184 = vperm.slane %v58, %v171
      %v185 = vsel %vm173, %v184, %v183
      %v186 = vperm.slane %v61, %v175
      %v187 = vsel %vm177, %v186, %v185
      %v188 = vperm.slane %v64, %v179
      %v189 = vsel %vm181, %v188, %v187
      %v192 = vadd.f32 %v158, %v182
      %v193 = vadd.f32 %v159, %v189
      %vm194 = vcmask 253952
      %195 = vst.msk [vmem:[#allocation5] sm:$0x1] %vm194, %v192
      %196 = vst.msk [vmem:[#allocation5 + $0x2] sm:$0x1] %vm194, %v193
      %v197 = vld [vmem:[#allocation5 + $0x1] sm:$0x1]
      %v198 = vld [vmem:[#allocation5 + $0x3] sm:$0x1]
      %v207 = vperm.slane %v67, %v169
      %v208 = vperm.slane %v70, %v171
      %v209 = vsel %vm173, %v208, %v207
      %v210 = vperm.slane %v73, %v175
      %v211 = vsel %vm177, %v210, %v209
      %v212 = vperm.slane %v76, %v179
      %v213 = vsel %vm181, %v212, %v211
      %v214 = vperm.slane %v79, %v169
      %v215 = vperm.slane %v82, %v171
      %v216 = vsel %vm173, %v215, %v214
      %v217 = vperm.slane %v85, %v175
      %v218 = vsel %vm177, %v217, %v216
      %v219 = vperm.slane %v88, %v179
      %v220 = vsel %vm181, %v219, %v218
      %v223 = vmax.f32 %v197, %v213
      %v224 = vmax.f32 %v198, %v220
      %225 = vst.msk [vmem:[#allocation5 + $0x1] sm:$0x1] %vm194, %v223
      %226 = vst.msk [vmem:[#allocation5 + $0x3] sm:$0x1] %vm194, %v224
    $region17: #{tpu_custom_call.1} parent=1 // pred_fallthru
      _
    // Predicated region
    $region18: #{tpu_custom_call.1} parent=1 // pred_check
      %p227 = pneg %p89
    $region19: #{tpu_custom_call.1} parent=1 // pred_check_branch
      %229 = sbr.rel (%p227) target = $region21
    $region20: #{tpu_custom_call.1} parent=1 // pred_region
      %v230 = vld [vmem:[#allocation5] sm:$0x1]
      %v231 = vld [vmem:[#allocation5 + $0x2] sm:$0x1]
      %v232 = vmul.f32 %v230, 0.00390625
      %v233 = vmul.f32 %v231, 0.00390625
      %vm234 = vcmask 253952
      %235 = vst.msk [vmem:[#allocation5] sm:$0x1] %vm234, %v232
      %236 = vst.msk [vmem:[#allocation5 + $0x2] sm:$0x1] %vm234, %v233
    $region21: #{tpu_custom_call.1} parent=1 // pred_fallthru
      _
    // Predicated region
    $region22: #{tpu_custom_call.1} parent=1 // pred_check
      _
    $region23: #{tpu_custom_call.1} parent=1 // pred_check_branch
      %238 = sbr.rel (0) target = $region25
    $region24: #{tpu_custom_call.1} parent=1 // pred_region
      %240 = vsyncadd [#allocation4], 0
      %s241 = sshll.u32 [#allocation5], 4
      %s242 = int_to_ptr.vmem [resolvable:$true] %s241
      %s243 = sshll.u32 %s1, 4
      %s244 = int_to_ptr.hbm [resolvable:$true] %s243
      %249 = dma.vmem_to_hbm [thread:$0]  %s242, 64, %s244, [#allocation4], 32, 32, 2
    $region25: #{tpu_custom_call.1} parent=1 // pred_fallthru
      _
    // Predicated region
    $region26: #{tpu_custom_call.1} parent=1 // pred_check
      _
    $region27: #{tpu_custom_call.1} parent=1 // pred_check_branch
      %251 = sbr.rel (0) target = $region29
    $region28: #{tpu_custom_call.1} parent=1 // pred_region
      %253 = dma.done [#allocation4], 64
    $region29: #{tpu_custom_call.1} parent=1 // pred_fallthru
      _
    %254 = vsyncpa [#allocation3], 1
    %255 = vsyncpa [#allocation4], 1

</llo_original>
